<compile_context>
chip_gen: v7x
topology: tpu7x:2x2x1
jax: 0.10.0
libtpu: 0.0.40
codegen_flags: <defaults>
</compile_context>

<pallas_src>
import functools
import numpy as np
import jax
import jax.numpy as jnp
from jax.experimental import pallas as pl
from jax.experimental.pallas import tpu as pltpu  # noqa: F401  (TPU backend)


# --------------------------------------------------------------------------------------
# Pallas kernel 1: fused GCN stack  (all layers in one launch)
# --------------------------------------------------------------------------------------
def _gcn_stack_kernel(adj_ref, x_ref, *refs, num_layers):
    # refs = (W0, b0, W1, b1, ..., W_{L-1}, b_{L-1}, out0, out1, ..., out_{L-1})
    w_refs = refs[:2 * num_layers]
    out_refs = refs[2 * num_layers:]
    adj = adj_ref[...]                              # bf16 [N, N]  (pre-cast outside)
    h = x_ref[...]                                  # f32  [N, F_in]
    for l in range(num_layers):                     # unrolled at trace time
        W = w_refs[2 * l][...]                      # bf16 [F_in, H]
        b = w_refs[2 * l + 1][...]                  # f32  [1, H]
        xw = jnp.dot(h.astype(jnp.bfloat16), W,
                     preferred_element_type=jnp.float32)
        agg = jnp.dot(adj, xw.astype(jnp.bfloat16),
                      preferred_element_type=jnp.float32)
        h = jnp.maximum(agg + b, 0.0)               # f32 [N, H]
        out_refs[l][...] = h


def gcn_stack_fused(adj_bf16, x, gcn_w, gcn_b):
    """One pallas_call for the whole GCN stack; returns the per-layer activations."""
    num_layers = len(gcn_w)
    N = x.shape[0]
    hidden = gcn_w[0].shape[1]
    flat_wb = [a for pair in zip(gcn_w, gcn_b) for a in pair]
    outs = pl.pallas_call(
        functools.partial(_gcn_stack_kernel, num_layers=num_layers),
        out_shape=[jax.ShapeDtypeStruct((N, hidden), jnp.float32)
                   for _ in range(num_layers)],
    )(adj_bf16, x.astype(jnp.float32), *flat_wb)
    return list(outs)


# --------------------------------------------------------------------------------------
# Pallas kernel 2: fused tail  (conv1d + ReLU + MaxPool1d(2) + fc1 + ReLU + fc2)
# --------------------------------------------------------------------------------------
def _tail_kernel(we_ref, wo_ref, cw_ref, cb_ref, w1_ref, b1_ref, w2_ref, b2_ref,
                 o_ref, *, B, half):
    bf16 = jnp.bfloat16
    cw = cw_ref[...]                                # bf16 [mlp_hidden, 16]
    cb = cb_ref[...]                                # f32  [1, 16]
    # conv1d(kernel=stride=mlp_hidden) as per-window matmul on even / odd windows.
    ce = jnp.dot(we_ref[...].astype(bf16), cw, preferred_element_type=jnp.float32) + cb
    co = jnp.dot(wo_ref[...].astype(bf16), cw, preferred_element_type=jnp.float32) + cb
    # relu + MaxPool1d(2):  max(relu(even), relu(odd)) == maxpool(relu(conv))
    maxed = jnp.maximum(jnp.maximum(ce, co), 0.0)   # [half*B, 16], rows ordered (t, b)
    # fc1 with the NCW flatten permutation folded into w1_ref[t] ([16, 128] per pair index t).
    acc = jnp.zeros((B, 128), jnp.float32)
    for t in range(half):                           # unrolled; half is small
        m_t = maxed[t * B:(t + 1) * B, :].astype(bf16)          # [B, 16]
        acc = acc + jnp.dot(m_t, w1_ref[t], preferred_element_type=jnp.float32)
    h1 = jnp.maximum(acc + b1_ref[...], 0.0)        # [B, 128]
    o_ref[...] = jnp.dot(h1.astype(bf16), w2_ref[...],
                         preferred_element_type=jnp.float32) + b2_ref[...]


def tail_fused(win_even, win_odd, prep, B, half):
    out_dim = prep["fc2_wt"].shape[1]
    return pl.pallas_call(
        functools.partial(_tail_kernel, B=B, half=half),
        out_shape=jax.ShapeDtypeStruct((B, out_dim), jnp.float32),
    )(win_even, win_odd, prep["conv_w"], prep["conv_b"],
      prep["fc1_wr"], prep["fc1_b"], prep["fc2_wt"], prep["fc2_b"])


# --------------------------------------------------------------------------------------
# Glue: GCN normalization, global_sort_pool (sort/gather) — kept in JAX
# --------------------------------------------------------------------------------------
def gcn_normalized_adjacency(edge_index_np, num_nodes):
    """Dense D^{-1/2}(A + I)D^{-1/2} matching PyG GCNConv (add_self_loops, symmetric norm)."""
    # TODO(synk): keep A sparse / tile the aggregation for large graphs; dense is fine at SEAL sizes.
    src = jnp.asarray(edge_index_np[0])
    dst = jnp.asarray(edge_index_np[1])
    adj = jnp.zeros((num_nodes, num_nodes), jnp.float32).at[dst, src].add(1.0)
    adj = adj + jnp.eye(num_nodes, dtype=jnp.float32)
    deg = adj.sum(axis=1)
    dinv = jax.lax.rsqrt(deg)
    return dinv[:, None] * adj * dinv[None, :]


def global_sort_pool(x, batch_np, k):
    """PyG global_sort_pool: per-graph sort by last channel (desc), keep top-k, zero-pad."""
    # TODO(synk): per-graph sort / top-k gather has no clean Pallas equivalent; kept in JAX.
    num_graphs = int(batch_np.max()) + 1
    counts = np.bincount(batch_np, minlength=num_graphs)
    max_n = int(counts.max())
    D = x.shape[1]

    pos = np.concatenate([np.arange(c) for c in counts]).astype(np.int32)
    dense = jnp.zeros((num_graphs, max_n, D), x.dtype).at[batch_np, pos].set(x)
    # validity mask from counts (no float-equality fill trick)
    valid = np.arange(max_n)[None, :] < counts[:, None]          # [B, max_n] bool (static)
    key = jnp.where(valid, dense[:, :, -1], -jnp.inf)            # invalid slots sort last
    order = jnp.argsort(-key, axis=1)                            # descending by last channel
    dense = jnp.take_along_axis(dense, order[:, :, None], axis=1)

    if max_n >= k:
        dense = dense[:, :k]
    else:
        dense = jnp.pad(dense, ((0, 0), (0, k - max_n), (0, 0)))
    return dense.reshape(num_graphs, -1)                         # [B, k*D]


# --------------------------------------------------------------------------------------
# DGCNN forward
# --------------------------------------------------------------------------------------
def dgcnn_forward(prepared, x, edge_index_np, batch_np, k):
    N = x.shape[0]
    adj_bf16 = gcn_normalized_adjacency(edge_index_np, N).astype(jnp.bfloat16)

    # --- GCN stack: one Pallas launch for all layers -------------------------------
    gcn_outs = gcn_stack_fused(adj_bf16, x, prepared["gcn_w"], prepared["gcn_b"])
    h = jnp.concatenate(gcn_outs, axis=-1)                       # [N, mlp_hidden]
    mlp_hidden = h.shape[1]

    # --- SortPooling (JAX) -----------------------------------------------------------
    pooled = global_sort_pool(h, batch_np, k)                    # [B, k*mlp_hidden]
    B = pooled.shape[0]
    half = k // 2

    # Pre-split even/odd conv1d windows in (pair t, graph b) row order — tiny XLA reshuffle
    # so the fused tail kernel needs no in-kernel reshape/transpose.
    w3 = pooled.reshape(B, k, mlp_hidden)[:, :2 * half].reshape(B, half, 2, mlp_hidden)
    win_even = w3[:, :, 0, :].transpose(1, 0, 2).reshape(half * B, mlp_hidden)
    win_odd = w3[:, :, 1, :].transpose(1, 0, 2).reshape(half * B, mlp_hidden)

    # --- conv1d + relu + maxpool + fc1 + relu + fc2: one Pallas launch -----------------
    return tail_fused(win_even, win_odd, prepared, B, half)


# --------------------------------------------------------------------------------------
# Params (torch layout) + one-time preparation into kernel-friendly layout
# --------------------------------------------------------------------------------------
def init_params(key, input_dim, hidden_dim, output_dim, num_layers, k):
    keys = jax.random.split(key, 4 + 2 * num_layers)
    params = {"gcn": []}
    in_dim = input_dim
    for l in range(num_layers):
        W = 0.1 * jax.random.normal(keys[2 * l], (in_dim, hidden_dim), jnp.float32)
        b = 0.1 * jax.random.normal(keys[2 * l + 1], (hidden_dim,), jnp.float32)
        params["gcn"].append((W, b))
        in_dim = hidden_dim
    mlp_hidden = hidden_dim * num_layers
    params["conv1d"] = (
        0.1 * jax.random.normal(keys[-4], (16, 1, mlp_hidden), jnp.float32),   # [16,1,mlp]
        0.1 * jax.random.normal(keys[-3], (16,), jnp.float32),
    )
    dense1_in = 16 * (k // 2)
    params["fc1"] = (
        0.1 * jax.random.normal(keys[-2], (128, dense1_in), jnp.float32),      # [128, 16*half]
        jnp.zeros((128,), jnp.float32),
    )
    params["fc2"] = (
        0.1 * jax.random.normal(keys[-1], (output_dim, 128), jnp.float32),     # [out, 128]
        jnp.zeros((output_dim,), jnp.float32),
    )
    return params


def prepare_params(params, k):
    """One-time transpose / rearrange / bf16-cast of static operands (outside the hot path)."""
    half = k // 2
    prep = {}
    prep["gcn_w"] = [W.astype(jnp.bfloat16) for (W, _) in params["gcn"]]
    prep["gcn_b"] = [b.reshape(1, -1).astype(jnp.float32) for (_, b) in params["gcn"]]

    cw, cb = params["conv1d"]                                    # [16,1,mlp], [16]
    mlp_hidden = cw.shape[-1]
    prep["conv_w"] = cw.reshape(16, mlp_hidden).T.astype(jnp.bfloat16)   # [mlp, 16]
    prep["conv_b"] = cb.reshape(1, 16).astype(jnp.float32)

    W1, b1 = params["fc1"]                                       # [128, 16*half], [128]
    # torch flatten of [B,16,half] uses in-feature index c*half + t -> fold into [half,16,128].
    prep["fc1_wr"] = W1.reshape(128, 16, half).transpose(2, 1, 0).astype(jnp.bfloat16)
    prep["fc1_b"] = b1.reshape(1, 128).astype(jnp.float32)

    W2, b2 = params["fc2"]                                       # [out, 128], [out]
    prep["fc2_wt"] = W2.T.astype(jnp.bfloat16)                   # [128, out]
    prep["fc2_b"] = b2.reshape(1, -1).astype(jnp.float32)
    return prep


if __name__ == "__main__":
    key = jax.random.PRNGKey(0)
    input_dim, hidden_dim, output_dim, num_layers = 4, 16, 2, 3
    proportional_k = 0.6

    # Two graphs of 10 nodes each (ring topology, undirected edges).
    nodes_per_graph = [10, 10]
    N = sum(nodes_per_graph)
    batch_np = np.concatenate(
        [np.full(c, g, dtype=np.int32) for g, c in enumerate(nodes_per_graph)]
    )
    src, dst, offset = [], [], 0
    for c in nodes_per_graph:
        for i in range(c):
            j = (i + 1) % c
            src += [offset + i, offset + j]
            dst += [offset + j, offset + i]
        offset += c
    edge_index_np = np.stack([np.asarray(src), np.asarray(dst)]).astype(np.int32)

    # k from proportional rule: int(mean(num_nodes) * 0.6)
    counts = np.bincount(batch_np)
    k = int(counts.mean() * proportional_k)   # = 6 here

    x = jax.random.normal(jax.random.split(key, 2)[0], (N, input_dim), jnp.float32)
    params = init_params(jax.random.split(key, 2)[1],
                         input_dim, hidden_dim, output_dim, num_layers, k)
    prepared = prepare_params(params, k)

    out = dgcnn_forward(prepared, x, edge_index_np, batch_np, k)
    jax.block_until_ready(out)
    assert out.shape == (len(nodes_per_graph), output_dim), out.shape
    print("KERNEL_OK")
</pallas_src>

<mosaic_0001>
module attributes {stable_mosaic.version = 11 : i64} {
  func.func @_gcn_stack_kernel(%arg0: memref<20x20xbf16, #tpu.memory_space<vmem>>, %arg1: memref<20x4xf32, #tpu.memory_space<vmem>>, %arg2: memref<4x16xbf16, #tpu.memory_space<vmem>>, %arg3: memref<1x16xf32, #tpu.memory_space<vmem>>, %arg4: memref<16x16xbf16, #tpu.memory_space<vmem>>, %arg5: memref<1x16xf32, #tpu.memory_space<vmem>>, %arg6: memref<16x16xbf16, #tpu.memory_space<vmem>>, %arg7: memref<1x16xf32, #tpu.memory_space<vmem>>, %arg8: memref<20x16xf32, #tpu.memory_space<vmem>>, %arg9: memref<20x16xf32, #tpu.memory_space<vmem>>, %arg10: memref<20x16xf32, #tpu.memory_space<vmem>>) attributes {dimension_semantics = [], scalar_prefetch = 0 : i64, scratch_operands = 0 : i64, tpu.core_type = #tpu.core_type<tc>} {
    %c0 = arith.constant 0 : index
    %c0_0 = arith.constant 0 : index
    %0 = vector.load %arg0[%c0, %c0_0] : memref<20x20xbf16, #tpu.memory_space<vmem>>, vector<20x20xbf16>
    %c0_1 = arith.constant 0 : index
    %c0_2 = arith.constant 0 : index
    %1 = vector.load %arg1[%c0_1, %c0_2] : memref<20x4xf32, #tpu.memory_space<vmem>>, vector<20x4xf32>
    %c0_3 = arith.constant 0 : index
    %c0_4 = arith.constant 0 : index
    %2 = vector.load %arg2[%c0_3, %c0_4] : memref<4x16xbf16, #tpu.memory_space<vmem>>, vector<4x16xbf16>
    %c0_5 = arith.constant 0 : index
    %c0_6 = arith.constant 0 : index
    %3 = vector.load %arg3[%c0_5, %c0_6] : memref<1x16xf32, #tpu.memory_space<vmem>>, vector<1x16xf32>
    %4 = arith.truncf %1 : vector<20x4xf32> to vector<20x4xbf16>
    %cst = arith.constant dense<0.000000e+00> : vector<20x16xf32>
    %5 = tpu.matmul %4, %2, %cst {dimension_numbers = #tpu.dot_dimension_numbers<[1], [0], [0], [1], [0, 0, 1, 1], [], []>} : vector<20x4xbf16>, vector<4x16xbf16>, vector<20x16xf32> -> vector<20x16xf32>
    %6 = arith.truncf %5 : vector<20x16xf32> to vector<20x16xbf16>
    %cst_7 = arith.constant dense<0.000000e+00> : vector<20x16xf32>
    %7 = tpu.matmul %0, %6, %cst_7 {dimension_numbers = #tpu.dot_dimension_numbers<[1], [0], [0], [1], [0, 0, 1, 1], [], []>} : vector<20x20xbf16>, vector<20x16xbf16>, vector<20x16xf32> -> vector<20x16xf32>
    %8 = vector.broadcast %3 : vector<1x16xf32> to vector<20x16xf32>
    %9 = arith.addf %7, %8 : vector<20x16xf32>
    %cst_8 = arith.constant 0.000000e+00 : f32
    %10 = vector.broadcast %cst_8 : f32 to vector<20x16xf32>
    %11 = arith.maximumf %9, %10 : vector<20x16xf32>
    %c0_9 = arith.constant 0 : index
    %c0_10 = arith.constant 0 : index
    %12 = vector.load %arg8[%c0_9, %c0_10] : memref<20x16xf32, #tpu.memory_space<vmem>>, vector<20x16xf32>
    tpu.vector_store %arg8[%c0_9, %c0_10], %11 {strides = array<i32>} : memref<20x16xf32, #tpu.memory_space<vmem>>, vector<20x16xf32>,
    %c0_11 = arith.constant 0 : index
    %c0_12 = arith.constant 0 : index
    %13 = vector.load %arg4[%c0_11, %c0_12] : memref<16x16xbf16, #tpu.memory_space<vmem>>, vector<16x16xbf16>
    %c0_13 = arith.constant 0 : index
    %c0_14 = arith.constant 0 : index
    %14 = vector.load %arg5[%c0_13, %c0_14] : memref<1x16xf32, #tpu.memory_space<vmem>>, vector<1x16xf32>
    %15 = arith.truncf %11 : vector<20x16xf32> to vector<20x16xbf16>
    %cst_15 = arith.constant dense<0.000000e+00> : vector<20x16xf32>
    %16 = tpu.matmul %15, %13, %cst_15 {dimension_numbers = #tpu.dot_dimension_numbers<[1], [0], [0], [1], [0, 0, 1, 1], [], []>} : vector<20x16xbf16>, vector<16x16xbf16>, vector<20x16xf32> -> vector<20x16xf32>
    %17 = arith.truncf %16 : vector<20x16xf32> to vector<20x16xbf16>
    %cst_16 = arith.constant dense<0.000000e+00> : vector<20x16xf32>
    %18 = tpu.matmul %0, %17, %cst_16 {dimension_numbers = #tpu.dot_dimension_numbers<[1], [0], [0], [1], [0, 0, 1, 1], [], []>} : vector<20x20xbf16>, vector<20x16xbf16>, vector<20x16xf32> -> vector<20x16xf32>
    %19 = vector.broadcast %14 : vector<1x16xf32> to vector<20x16xf32>
    %20 = arith.addf %18, %19 : vector<20x16xf32>
    %cst_17 = arith.constant 0.000000e+00 : f32
    %21 = vector.broadcast %cst_17 : f32 to vector<20x16xf32>
    %22 = arith.maximumf %20, %21 : vector<20x16xf32>
    %c0_18 = arith.constant 0 : index
    %c0_19 = arith.constant 0 : index
    %23 = vector.load %arg9[%c0_18, %c0_19] : memref<20x16xf32, #tpu.memory_space<vmem>>, vector<20x16xf32>
    tpu.vector_store %arg9[%c0_18, %c0_19], %22 {strides = array<i32>} : memref<20x16xf32, #tpu.memory_space<vmem>>, vector<20x16xf32>,
    %c0_20 = arith.constant 0 : index
    %c0_21 = arith.constant 0 : index
    %24 = vector.load %arg6[%c0_20, %c0_21] : memref<16x16xbf16, #tpu.memory_space<vmem>>, vector<16x16xbf16>
    %c0_22 = arith.constant 0 : index
    %c0_23 = arith.constant 0 : index
    %25 = vector.load %arg7[%c0_22, %c0_23] : memref<1x16xf32, #tpu.memory_space<vmem>>, vector<1x16xf32>
    %26 = arith.truncf %22 : vector<20x16xf32> to vector<20x16xbf16>
    %cst_24 = arith.constant dense<0.000000e+00> : vector<20x16xf32>
    %27 = tpu.matmul %26, %24, %cst_24 {dimension_numbers = #tpu.dot_dimension_numbers<[1], [0], [0], [1], [0, 0, 1, 1], [], []>} : vector<20x16xbf16>, vector<16x16xbf16>, vector<20x16xf32> -> vector<20x16xf32>
    %28 = arith.truncf %27 : vector<20x16xf32> to vector<20x16xbf16>
    %cst_25 = arith.constant dense<0.000000e+00> : vector<20x16xf32>
    %29 = tpu.matmul %0, %28, %cst_25 {dimension_numbers = #tpu.dot_dimension_numbers<[1], [0], [0], [1], [0, 0, 1, 1], [], []>} : vector<20x20xbf16>, vector<20x16xbf16>, vector<20x16xf32> -> vector<20x16xf32>
    %30 = vector.broadcast %25 : vector<1x16xf32> to vector<20x16xf32>
    %31 = arith.addf %29, %30 : vector<20x16xf32>
    %cst_26 = arith.constant 0.000000e+00 : f32
    %32 = vector.broadcast %cst_26 : f32 to vector<20x16xf32>
    %33 = arith.maximumf %31, %32 : vector<20x16xf32>
    %c0_27 = arith.constant 0 : index
    %c0_28 = arith.constant 0 : index
    %34 = vector.load %arg10[%c0_27, %c0_28] : memref<20x16xf32, #tpu.memory_space<vmem>>, vector<20x16xf32>
    tpu.vector_store %arg10[%c0_27, %c0_28], %33 {strides = array<i32>} : memref<20x16xf32, #tpu.memory_space<vmem>>, vector<20x16xf32>,
    return
  }
}

</mosaic_0001>

<llo_original>
// kernel: tpu_custom_call.1
$region0: #{tpu_custom_call.1}
  #allocation0 [shape = 'u32[]', space=smem, size = 0x4, offset = 0x4, fixed_abs, tag = 'smem constant byte address 0x4 - core index']
  #allocation1 [shape = 'u32[144,128]{1,0:T(1,128)}', space=vmem, size = 0x12000, scoped, tag = 'internal scratch']
  %s0 = inlined_call_operand.vmem [shape: bf16[20,20], index: 0, kind: input, shape index: {}]
  %s1 = inlined_call_operand.vmem [shape: f32[20,4], index: 1, kind: input, shape index: {}]
  %s2 = inlined_call_operand.vmem [shape: bf16[4,16], index: 2, kind: input, shape index: {}]
  %s3 = inlined_call_operand.vmem [shape: f32[1,16], index: 3, kind: input, shape index: {}]
  %s4 = inlined_call_operand.vmem [shape: bf16[16,16], index: 4, kind: input, shape index: {}]
  %s5 = inlined_call_operand.vmem [shape: f32[1,16], index: 5, kind: input, shape index: {}]
  %s6 = inlined_call_operand.vmem [shape: bf16[16,16], index: 6, kind: input, shape index: {}]
  %s7 = inlined_call_operand.vmem [shape: f32[1,16], index: 7, kind: input, shape index: {}]
  %s8 = inlined_call_operand.vmem [shape: f32[20,16], index: 8, kind: output, shape index: {0}]
  %s9 = inlined_call_operand.vmem [shape: f32[20,16], index: 9, kind: output, shape index: {1}]
  %s10 = inlined_call_operand.vmem [shape: f32[20,16], index: 10, kind: output, shape index: {2}]
  %11 = xla_tuple %s8, %s9, %s10
  %s12 = sld [smem:[#allocation0]]
  $region58: #{tpu_custom_call.1} parent=0
    _
  %s14 = ssub.s32 1, %s12
  %s15 = scalar_select 0, %s14, %s12
  // Predicated region
  $region2: #{tpu_custom_call.1} parent=0 // pred_check
    _
  $region3: #{tpu_custom_call.1} parent=0 // pred_check_branch
    %17 = sbr.rel (0) target = $region5
  $region4: #{tpu_custom_call.1} parent=0 // pred_region
    _
  $region5: #{tpu_custom_call.1} parent=0 // pred_fallthru
    _
  // Predicated region
  $region6: #{tpu_custom_call.1} parent=0 // pred_check
    _
  $region7: #{tpu_custom_call.1} parent=0 // pred_check_branch
    %19 = sbr.rel (0) target = $region9
  $region8: #{tpu_custom_call.1} parent=0 // pred_region
    _
  $region9: #{tpu_custom_call.1} parent=0 // pred_fallthru
    _
  // Predicated region
  $region10: #{tpu_custom_call.1} parent=0 // pred_check
    _
  $region11: #{tpu_custom_call.1} parent=0 // pred_check_branch
    %21 = sbr.rel (0) target = $region13
  $region12: #{tpu_custom_call.1} parent=0 // pred_region
    _
  $region13: #{tpu_custom_call.1} parent=0 // pred_fallthru
    _
  // Predicated region
  $region14: #{tpu_custom_call.1} parent=0 // pred_check
    _
  $region15: #{tpu_custom_call.1} parent=0 // pred_check_branch
    %23 = sbr.rel (0) target = $region17
  $region16: #{tpu_custom_call.1} parent=0 // pred_region
    _
  $region17: #{tpu_custom_call.1} parent=0 // pred_fallthru
    _
  // Predicated region
  $region18: #{tpu_custom_call.1} parent=0 // pred_check
    _
  $region19: #{tpu_custom_call.1} parent=0 // pred_check_branch
    %25 = sbr.rel (0) target = $region21
  $region20: #{tpu_custom_call.1} parent=0 // pred_region
    _
  $region21: #{tpu_custom_call.1} parent=0 // pred_fallthru
    _
  // Predicated region
  $region22: #{tpu_custom_call.1} parent=0 // pred_check
    _
  $region23: #{tpu_custom_call.1} parent=0 // pred_check_branch
    %27 = sbr.rel (0) target = $region25
  $region24: #{tpu_custom_call.1} parent=0 // pred_region
    _
  $region25: #{tpu_custom_call.1} parent=0 // pred_fallthru
    _
  // Predicated region
  $region26: #{tpu_custom_call.1} parent=0 // pred_check
    _
  $region27: #{tpu_custom_call.1} parent=0 // pred_check_branch
    %29 = sbr.rel (0) target = $region29
  $region28: #{tpu_custom_call.1} parent=0 // pred_region
    _
  $region29: #{tpu_custom_call.1} parent=0 // pred_fallthru
    _
  // Predicated region
  $region30: #{tpu_custom_call.1} parent=0 // pred_check
    _
  $region31: #{tpu_custom_call.1} parent=0 // pred_check_branch
    %31 = sbr.rel (0) target = $region33
  $region32: #{tpu_custom_call.1} parent=0 // pred_region
    _
  $region33: #{tpu_custom_call.1} parent=0 // pred_fallthru
    _
  %v33 = vld [vmem:[%s0] sm:$0xf]
  %v34 = vld [vmem:[%s0 + $0x4] sm:$0xf]
  %v35 = vld [vmem:[%s0 + $0x8] sm:$0x3]
  %v36 = vld [vmem:[%s1] sm:$0xff]
  %v37 = vld [vmem:[%s1 + $0x8] sm:$0xff]
  %v38 = vld [vmem:[%s1 + $0x10] sm:$0xf]
  %v39 = vld [vmem:[%s2] sm:$0x3]
  %v40 = vld [vmem:[%s3] sm:$0x1]
  %v41 = vpack.c.bf16 %v37, %v36
  %v42 = vpack.c.bf16 %v38, %v38
  %vm43 = vcmask 31744
  %v45 = vsel %vm43, %v41, 0
  %v48 = vsel %vm43, %v42, 0
  %vm50 = vcmask 1041408
  %v52 = vsel %vm50, %v39, 0
  %54 = vmatprep.subr.bf16.mxu0 0
  %55 = vmatpush1.bf16.msra.mxu0 %v52
  %56 = vmatprep.subr.bf16.mxu0 0
  %57 = vmatpush1.bf16.msra.mxu0 0
  %58 = vmatprep.subr.bf16.mxu0 0
  %59 = vmatpush1.bf16.msra.mxu0 0
  %60 = vmatprep.subr.bf16.mxu0 0
  %61 = vmatpush1.bf16.msra.mxu0 0
  %62 = vmatprep.subr.bf16.mxu0 0
  %63 = vmatpush1.bf16.msra.mxu0 0
  %64 = vmatprep.subr.bf16.mxu0 0
  %65 = vmatpush1.bf16.msra.mxu0 0
  %66 = vmatprep.subr.bf16.mxu0 0
  %67 = vmatpush1.bf16.msra.mxu0 0
  %68 = vmatprep.subr.bf16.mxu0 0
  %69 = vmatpush1.bf16.msra.mxu0 0
  %70 = vmatprep.subr.bf16.mxu0 0
  %71 = vmatpush1.bf16.msra.mxu0 0
  %72 = vmatprep.subr.bf16.mxu0 0
  %73 = vmatpush1.bf16.msra.mxu0 0
  %74 = vmatprep.subr.bf16.mxu0 0
  %75 = vmatpush1.bf16.msra.mxu0 0
  %76 = vmatprep.subr.bf16.mxu0 0
  %77 = vmatpush1.bf16.msra.mxu0 0
  %78 = vmatprep.subr.bf16.mxu0 0
  %79 = vmatpush1.bf16.msra.mxu0 0
  %80 = vmatprep.subr.bf16.mxu0 0
  %81 = vmatpush1.bf16.msra.mxu0 0
  %82 = vmatprep.subr.bf16.mxu0 0
  %83 = vmatpush1.bf16.msra.mxu0 0
  %84 = vmatprep.subr.bf16.mxu0 0
  %85 = vmatpush1.bf16.msra.mxu0 0
  %86 = vmatprep.mubr.bf16.mxu0 0
  %87 = vmatmul.mubr.bf16.gmra.mrb[0].mxu0 %v45
  %v88 = vpop.f32.mrb[0].mxu0
  %v89 = vadd.f32 0.0, %v88
  %v90 = vpop.f32.mrb[0].mxu0
  %v91 = vpop.f32.mrb[0].mxu0
  %v92 = vadd.f32 0.0, %v91
  %v93 = vpop.f32.mrb[0].mxu0
  %94 = vmatprep.mubr.bf16.mxu0 0
  %95 = vmatmul.mubr.bf16.gmra.mrb[0].mxu0 %v48
  %v96 = vpop.f32.mrb[0].mxu0
  %v97 = vadd.f32 0.0, %v96
  %v98 = vpop.f32.mrb[0].mxu0
  %v99 = vpop.f32.mrb[0].mxu0
  %v100 = vpop.f32.mrb[0].mxu0
  %101 = vdwg.mxu0
  %v102 = vpack.c.bf16 %v92, %v89
  %v103 = vpack.c.bf16 %v97, %v97
  %v105 = vlaneseq
  %v106 = vshrl.u32 %v105, 7
  %v107 = vsub.s32 0, %v106
  %v108 = vrot.slane %v40, %v107
  %v113 = vunpack.c.l.b16 %v33
  %v114 = vunpack.c.l.b16 %v34
  %v115 = vunpack.c.l.b16 %v35
  %v116 = vpack.c.b16 %v114, %v113
  %v117 = vpack.c.b16 %v115, %v115
  %vm118 = vcmask 162816
  %v120 = vsel %vm118, %v116, 0
  %v123 = vsel %vm118, %v117, 0
  %v126 = vsel %vm50, %v103, 0
  %128 = vmatprep.subr.bf16.mxu0 0
  %129 = vmatpush1.bf16.msra.mxu0 %v102
  %130 = vmatprep.subr.bf16.mxu0 0
  %131 = vmatpush1.bf16.msra.mxu0 %v126
  %132 = vmatprep.subr.bf16.mxu0 0
  %133 = vmatpush1.bf16.msra.mxu0 0
  %134 = vmatprep.subr.bf16.mxu0 0
  %135 = vmatpush1.bf16.msra.mxu0 0
  %136 = vmatprep.subr.bf16.mxu0 0
  %137 = vmatpush1.bf16.msra.mxu0 0
  %138 = vmatprep.subr.bf16.mxu0 0
  %139 = vmatpush1.bf16.msra.mxu0 0
  %140 = vmatprep.subr.bf16.mxu0 0
  %141 = vmatpush1.bf16.msra.mxu0 0
  %142 = vmatprep.subr.bf16.mxu0 0
  %143 = vmatpush1.bf16.msra.mxu0 0
  %144 = vmatprep.subr.bf16.mxu0 0
  %145 = vmatpush1.bf16.msra.mxu0 0
  %146 = vmatprep.subr.bf16.mxu0 0
  %147 = vmatpush1.bf16.msra.mxu0 0
  %148 = vmatprep.subr.bf16.mxu0 0
  %149 = vmatpush1.bf16.msra.mxu0 0
  %150 = vmatprep.subr.bf16.mxu0 0
  %151 = vmatpush1.bf16.msra.mxu0 0
  %152 = vmatprep.subr.bf16.mxu0 0
  %153 = vmatpush1.bf16.msra.mxu0 0
  %154 = vmatprep.subr.bf16.mxu0 0
  %155 = vmatpush1.bf16.msra.mxu0 0
  %156 = vmatprep.subr.bf16.mxu0 0
  %157 = vmatpush1.bf16.msra.mxu0 0
  %158 = vmatprep.subr.bf16.mxu0 0
  %159 = vmatpush1.bf16.msra.mxu0 0
  %160 = vmatprep.mubr.bf16.mxu0 0
  %161 = vmatmul.mubr.bf16.gmra.mrb[0].mxu0 %v120
  %v162 = vpop.f32.mrb[0].mxu0
  %v163 = vadd.f32 %v108, %v162
  %v164 = vpop.f32.mrb[0].mxu0
  %v165 = vpop.f32.mrb[0].mxu0
  %v166 = vadd.f32 %v108, %v165
  %v167 = vpop.f32.mrb[0].mxu0
  %168 = vmatprep.mubr.bf16.mxu0 0
  %169 = vmatmul.mubr.bf16.gmra.mrb[0].mxu0 %v123
  %v170 = vpop.f32.mrb[0].mxu0
  %v171 = vadd.f32 %v108, %v170
  %v172 = vpop.f32.mrb[0].mxu0
  %v173 = vpop.f32.mrb[0].mxu0
  %v174 = vpop.f32.mrb[0].mxu0
  %175 = vdwg.mxu0
  %v176 = vmax.f32 %v163, 0.0
  %v177 = vmax.f32 %v166, 0.0
  %v178 = vmax.f32 %v171, 0.0
  %vm179 = vcmask 130048
  %180 = vst.msk [vmem:[%s8] sm:$0xff] %vm179, %v176
  %181 = vst.msk [vmem:[%s8 + $0x8] sm:$0xff] %vm179, %v177
  %vm182 = vcmask 125952
  %183 = vst.msk [vmem:[%s8 + $0x10] sm:$0xf] %vm182, %v178
  %v184 = vld [vmem:[%s4] sm:$0xf]
  %v185 = vld [vmem:[%s4 + $0x4] sm:$0xf]
  %v186 = vld [vmem:[%s5] sm:$0x1]
  %v187 = vpack.c.bf16 %v177, %v176
  %v188 = vpack.c.bf16 %v178, %v178
  %v191 = vunpack.c.l.b16 %v184
  %v192 = vunpack.c.l.b16 %v185
  %v193 = vpack.c.b16 %v192, %v191
  %v196 = vsel %vm179, %v187, 0
  %v199 = vsel %vm179, %v188, 0
  %201 = vmatprep.subr.bf16.mxu0 0
  %202 = vmatpush1.bf16.msra.mxu0 %v193
  %203 = vmatprep.subr.bf16.mxu0 0
  %204 = vmatpush1.bf16.msra.mxu0 0
  %205 = vmatprep.subr.bf16.mxu0 0
  %206 = vmatpush1.bf16.msra.mxu0 0
  %207 = vmatprep.subr.bf16.mxu0 0
  %208 = vmatpush1.bf16.msra.mxu0 0
  %209 = vmatprep.subr.bf16.mxu0 0
  %210 = vmatpush1.bf16.msra.mxu0 0
  %211 = vmatprep.subr.bf16.mxu0 0
  %212 = vmatpush1.bf16.msra.mxu0 0
  %213 = vmatprep.subr.bf16.mxu0 0
  %214 = vmatpush1.bf16.msra.mxu0 0
  %215 = vmatprep.subr.bf16.mxu0 0
  %216 = vmatpush1.bf16.msra.mxu0 0
  %217 = vmatprep.subr.bf16.mxu0 0
  %218 = vmatpush1.bf16.msra.mxu0 0
  %219 = vmatprep.subr.bf16.mxu0 0
  %220 = vmatpush1.bf16.msra.mxu0 0
  %221 = vmatprep.subr.bf16.mxu0 0
  %222 = vmatpush1.bf16.msra.mxu0 0
  %223 = vmatprep.subr.bf16.mxu0 0
  %224 = vmatpush1.bf16.msra.mxu0 0
  %225 = vmatprep.subr.bf16.mxu0 0
  %226 = vmatpush1.bf16.msra.mxu0 0
  %227 = vmatprep.subr.bf16.mxu0 0
  %228 = vmatpush1.bf16.msra.mxu0 0
  %229 = vmatprep.subr.bf16.mxu0 0
  %230 = vmatpush1.bf16.msra.mxu0 0
  %231 = vmatprep.subr.bf16.mxu0 0
  %232 = vmatpush1.bf16.msra.mxu0 0
  %233 = vmatprep.mubr.bf16.mxu0 0
  %234 = vmatmul.mubr.bf16.gmra.mrb[0].mxu0 %v196
  %v235 = vpop.f32.mrb[0].mxu0
  %v236 = vadd.f32 0.0, %v235
  %v237 = vpop.f32.mrb[0].mxu0
  %v238 = vpop.f32.mrb[0].mxu0
  %v239 = vadd.f32 0.0, %v238
  %v240 = vpop.f32.mrb[0].mxu0
  %241 = vmatprep.mubr.bf16.mxu0 0
  %242 = vmatmul.mubr.bf16.gmra.mrb[0].mxu0 %v199
  %v243 = vpop.f32.mrb[0].mxu0
  %v244 = vadd.f32 0.0, %v243
  %v245 = vpop.f32.mrb[0].mxu0
  %v246 = vpop.f32.mrb[0].mxu0
  %v247 = vpop.f32.mrb[0].mxu0
  %248 = vdwg.mxu0
  %v249 = vpack.c.bf16 %v239, %v236
  %v250 = vpack.c.bf16 %v244, %v244
  %v252 = vlaneseq
  %v253 = vshrl.u32 %v252, 7
  %v254 = vsub.s32 0, %v253
  %v255 = vrot.slane %v186, %v254
  %v258 = vsel %vm50, %v250, 0
  %260 = vmatprep.subr.bf16.mxu0 0
  %261 = vmatpush1.bf16.msra.mxu0 %v249
  %262 = vmatprep.subr.bf16.mxu0 0
  %263 = vmatpush1.bf16.msra.mxu0 %v258
  %264 = vmatprep.subr.bf16.mxu0 0
  %265 = vmatpush1.bf16.msra.mxu0 0
  %266 = vmatprep.subr.bf16.mxu0 0
  %267 = vmatpush1.bf16.msra.mxu0 0
  %268 = vmatprep.subr.bf16.mxu0 0
  %269 = vmatpush1.bf16.msra.mxu0 0
  %270 = vmatprep.subr.bf16.mxu0 0
  %271 = vmatpush1.bf16.msra.mxu0 0
  %272 = vmatprep.subr.bf16.mxu0 0
  %273 = vmatpush1.bf16.msra.mxu0 0
  %274 = vmatprep.subr.bf16.mxu0 0
  %275 = vmatpush1.bf16.msra.mxu0 0
  %276 = vmatprep.subr.bf16.mxu0 0
  %277 = vmatpush1.bf16.msra.mxu0 0
  %278 = vmatprep.subr.bf16.mxu0 0
  %279 = vmatpush1.bf16.msra.mxu0 0
  %280 = vmatprep.subr.bf16.mxu0 0
  %281 = vmatpush1.bf16.msra.mxu0 0
  %282 = vmatprep.subr.bf16.mxu0 0
  %283 = vmatpush1.bf16.msra.mxu0 0
  %284 = vmatprep.subr.bf16.mxu0 0
  %285 = vmatpush1.bf16.msra.mxu0 0
  %286 = vmatprep.subr.bf16.mxu0 0
  %287 = vmatpush1.bf16.msra.mxu0 0
  %288 = vmatprep.subr.bf16.mxu0 0
  %289 = vmatpush1.bf16.msra.mxu0 0
  %290 = vmatprep.subr.bf16.mxu0 0
  %291 = vmatpush1.bf16.msra.mxu0 0
  %292 = vmatprep.mubr.bf16.mxu0 0
  %293 = vmatmul.mubr.bf16.gmra.mrb[0].mxu0 %v120
  %v294 = vpop.f32.mrb[0].mxu0
  %v295 = vadd.f32 %v255, %v294
  %v296 = vpop.f32.mrb[0].mxu0
  %v297 = vpop.f32.mrb[0].mxu0
  %v298 = vadd.f32 %v255, %v297
  %v299 = vpop.f32.mrb[0].mxu0
  %300 = vmatprep.mubr.bf16.mxu0 0
  %301 = vmatmul.mubr.bf16.gmra.mrb[0].mxu0 %v123
  %v302 = vpop.f32.mrb[0].mxu0
  %v303 = vadd.f32 %v255, %v302
  %v304 = vpop.f32.mrb[0].mxu0
  %v305 = vpop.f32.mrb[0].mxu0
  %v306 = vpop.f32.mrb[0].mxu0
  %307 = vdwg.mxu0
  %v308 = vmax.f32 %v295, 0.0
  %v309 = vmax.f32 %v298, 0.0
  %v310 = vmax.f32 %v303, 0.0
  %311 = vst.msk [vmem:[%s9] sm:$0xff] %vm179, %v308
  %312 = vst.msk [vmem:[%s9 + $0x8] sm:$0xff] %vm179, %v309
  %313 = vst.msk [vmem:[%s9 + $0x10] sm:$0xf] %vm182, %v310
  %v314 = vld [vmem:[%s6] sm:$0xf]
  %v315 = vld [vmem:[%s6 + $0x4] sm:$0xf]
  %v316 = vld [vmem:[%s7] sm:$0x1]
  %v317 = vpack.c.bf16 %v309, %v308
  %v318 = vpack.c.bf16 %v310, %v310
  %v321 = vunpack.c.l.b16 %v314
  %v322 = vunpack.c.l.b16 %v315
  %v323 = vpack.c.b16 %v322, %v321
  %v326 = vsel %vm179, %v317, 0
  %v329 = vsel %vm179, %v318, 0
  %331 = vmatprep.subr.bf16.mxu0 0
  %332 = vmatpush1.bf16.msra.mxu0 %v323
  %333 = vmatprep.subr.bf16.mxu0 0
  %334 = vmatpush1.bf16.msra.mxu0 0
  %335 = vmatprep.subr.bf16.mxu0 0
  %336 = vmatpush1.bf16.msra.mxu0 0
  %337 = vmatprep.subr.bf16.mxu0 0
  %338 = vmatpush1.bf16.msra.mxu0 0
  %339 = vmatprep.subr.bf16.mxu0 0
  %340 = vmatpush1.bf16.msra.mxu0 0
  %341 = vmatprep.subr.bf16.mxu0 0
  %342 = vmatpush1.bf16.msra.mxu0 0
  %343 = vmatprep.subr.bf16.mxu0 0
  %344 = vmatpush1.bf16.msra.mxu0 0
  %345 = vmatprep.subr.bf16.mxu0 0
  %346 = vmatpush1.bf16.msra.mxu0 0
  %347 = vmatprep.subr.bf16.mxu0 0
  %348 = vmatpush1.bf16.msra.mxu0 0
  %349 = vmatprep.subr.bf16.mxu0 0
  %350 = vmatpush1.bf16.msra.mxu0 0
  %351 = vmatprep.subr.bf16.mxu0 0
  %352 = vmatpush1.bf16.msra.mxu0 0
  %353 = vmatprep.subr.bf16.mxu0 0
  %354 = vmatpush1.bf16.msra.mxu0 0
  %355 = vmatprep.subr.bf16.mxu0 0
  %356 = vmatpush1.bf16.msra.mxu0 0
  %357 = vmatprep.subr.bf16.mxu0 0
  %358 = vmatpush1.bf16.msra.mxu0 0
  %359 = vmatprep.subr.bf16.mxu0 0
  %360 = vmatpush1.bf16.msra.mxu0 0
  %361 = vmatprep.subr.bf16.mxu0 0
  %362 = vmatpush1.bf16.msra.mxu0 0
  %363 = vmatprep.mubr.bf16.mxu0 0
  %364 = vmatmul.mubr.bf16.gmra.mrb[0].mxu0 %v326
  %v365 = vpop.f32.mrb[0].mxu0
  %v366 = vadd.f32 0.0, %v365
  %v367 = vpop.f32.mrb[0].mxu0
  %v368 = vpop.f32.mrb[0].mxu0
  %v369 = vadd.f32 0.0, %v368
  %v370 = vpop.f32.mrb[0].mxu0
  %371 = vmatprep.mubr.bf16.mxu0 0
  %372 = vmatmul.mubr.bf16.gmra.mrb[0].mxu0 %v329
  %v373 = vpop.f32.mrb[0].mxu0
  %v374 = vadd.f32 0.0, %v373
  %v375 = vpop.f32.mrb[0].mxu0
  %v376 = vpop.f32.mrb[0].mxu0
  %v377 = vpop.f32.mrb[0].mxu0
  %378 = vdwg.mxu0
  %v379 = vpack.c.bf16 %v369, %v366
  %v380 = vpack.c.bf16 %v374, %v374
  %v382 = vlaneseq
  %v383 = vshrl.u32 %v382, 7
  %v384 = vsub.s32 0, %v383
  %v385 = vrot.slane %v316, %v384
  %v388 = vsel %vm50, %v380, 0
  %390 = vmatprep.subr.bf16.mxu0 0
  %391 = vmatpush1.bf16.msra.mxu0 %v379
  %392 = vmatprep.subr.bf16.mxu0 0
  %393 = vmatpush1.bf16.msra.mxu0 %v388
  %394 = vmatprep.subr.bf16.mxu0 0
  %395 = vmatpush1.bf16.msra.mxu0 0
  %396 = vmatprep.subr.bf16.mxu0 0
  %397 = vmatpush1.bf16.msra.mxu0 0
  %398 = vmatprep.subr.bf16.mxu0 0
  %399 = vmatpush1.bf16.msra.mxu0 0
  %400 = vmatprep.subr.bf16.mxu0 0
  %401 = vmatpush1.bf16.msra.mxu0 0
  %402 = vmatprep.subr.bf16.mxu0 0
  %403 = vmatpush1.bf16.msra.mxu0 0
  %404 = vmatprep.subr.bf16.mxu0 0
  %405 = vmatpush1.bf16.msra.mxu0 0
  %406 = vmatprep.subr.bf16.mxu0 0
  %407 = vmatpush1.bf16.msra.mxu0 0
  %408 = vmatprep.subr.bf16.mxu0 0
  %409 = vmatpush1.bf16.msra.mxu0 0
  %410 = vmatprep.subr.bf16.mxu0 0
  %411 = vmatpush1.bf16.msra.mxu0 0
  %412 = vmatprep.subr.bf16.mxu0 0
  %413 = vmatpush1.bf16.msra.mxu0 0
  %414 = vmatprep.subr.bf16.mxu0 0
  %415 = vmatpush1.bf16.msra.mxu0 0
  %416 = vmatprep.subr.bf16.mxu0 0
  %417 = vmatpush1.bf16.msra.mxu0 0
  %418 = vmatprep.subr.bf16.mxu0 0
  %419 = vmatpush1.bf16.msra.mxu0 0
  %420 = vmatprep.subr.bf16.mxu0 0
  %421 = vmatpush1.bf16.msra.mxu0 0
  %422 = vmatprep.mubr.bf16.mxu0 0
  %423 = vmatmul.mubr.bf16.gmra.mrb[0].mxu0 %v120
  %v424 = vpop.f32.mrb[0].mxu0
  %v425 = vadd.f32 %v385, %v424
  %v426 = vpop.f32.mrb[0].mxu0
  %v427 = vpop.f32.mrb[0].mxu0
  %v428 = vadd.f32 %v385, %v427
  %v429 = vpop.f32.mrb[0].mxu0
  %430 = vmatprep.mubr.bf16.mxu0 0
  %431 = vmatmul.mubr.bf16.gmra.mrb[0].mxu0 %v123
  %v432 = vpop.f32.mrb[0].mxu0
  %v433 = vadd.f32 %v385, %v432
  %v434 = vpop.f32.mrb[0].mxu0
  %v435 = vpop.f32.mrb[0].mxu0
  %v436 = vpop.f32.mrb[0].mxu0
  %437 = vdwg.mxu0
  %v438 = vmax.f32 %v425, 0.0
  %v439 = vmax.f32 %v428, 0.0
  %v440 = vmax.f32 %v433, 0.0
  %441 = vst.msk [vmem:[%s10] sm:$0xff] %vm179, %v438
  %442 = vst.msk [vmem:[%s10 + $0x8] sm:$0xff] %vm179, %v439
  %443 = vst.msk [vmem:[%s10 + $0x10] sm:$0xf] %vm182, %v440
  // Predicated region
  $region34: #{tpu_custom_call.1} parent=0 // pred_check
    _
  $region35: #{tpu_custom_call.1} parent=0 // pred_check_branch
    %445 = sbr.rel (0) target = $region37
  $region36: #{tpu_custom_call.1} parent=0 // pred_region
    _
  $region37: #{tpu_custom_call.1} parent=0 // pred_fallthru
    _
  // Predicated region
  $region38: #{tpu_custom_call.1} parent=0 // pred_check
    _
  $region39: #{tpu_custom_call.1} parent=0 // pred_check_branch
    %447 = sbr.rel (0) target = $region41
  $region40: #{tpu_custom_call.1} parent=0 // pred_region
    _
  $region41: #{tpu_custom_call.1} parent=0 // pred_fallthru
    _
  // Predicated region
  $region42: #{tpu_custom_call.1} parent=0 // pred_check
    _
  $region43: #{tpu_custom_call.1} parent=0 // pred_check_branch
    %449 = sbr.rel (0) target = $region45
  $region44: #{tpu_custom_call.1} parent=0 // pred_region
    _
  $region45: #{tpu_custom_call.1} parent=0 // pred_fallthru
    _
  // Predicated region
  $region46: #{tpu_custom_call.1} parent=0 // pred_check
    _
  $region47: #{tpu_custom_call.1} parent=0 // pred_check_branch
    %451 = sbr.rel (0) target = $region49
  $region48: #{tpu_custom_call.1} parent=0 // pred_region
    _
  $region49: #{tpu_custom_call.1} parent=0 // pred_fallthru
    _
  // Predicated region
  $region50: #{tpu_custom_call.1} parent=0 // pred_check
    _
  $region51: #{tpu_custom_call.1} parent=0 // pred_check_branch
    %453 = sbr.rel (0) target = $region53
  $region52: #{tpu_custom_call.1} parent=0 // pred_region
    _
  $region53: #{tpu_custom_call.1} parent=0 // pred_fallthru
    _
  // Predicated region
  $region54: #{tpu_custom_call.1} parent=0 // pred_check
    _
  $region55: #{tpu_custom_call.1} parent=0 // pred_check_branch
    %455 = sbr.rel (0) target = $region57
  $region56: #{tpu_custom_call.1} parent=0 // pred_region
    _
  $region57: #{tpu_custom_call.1} parent=0 // pred_fallthru
    _

</llo_original>
